<compile_context>
chip_gen: v7x
topology: tpu7x:2x2x1
jax: 0.10.0
libtpu: 0.0.40
codegen_flags: <defaults>
</compile_context>

<pallas_src>
import jax
import jax.numpy as jnp
from jax.experimental import pallas as pl
from jax.experimental.pallas import tpu as pltpu

SUBLANE = 16  # covers f32 (8-row) and bf16 (16-row) sublane packing


def _round_up(x, m):
    return ((x + m - 1) // m) * m


def _cdiv(a, b):
    return -(-a // b)


def _relu_linear_kernel(x_ref, w_ref, b_ref, o_ref):
    # ReLU in f32 on the VPU (no bf16 VALU ops emitted -> safe on v5e).
    h = jnp.maximum(x_ref[...].astype(jnp.float32), 0.0)
    # Single MXU matmul; operands in the weight dtype (bf16 by default), f32 accumulation.
    y = jnp.dot(h.astype(w_ref.dtype), w_ref[...], preferred_element_type=jnp.float32)
    # Bias-add in f32, lane-masked store of the real (unpadded) d_out.
    o_ref[...] = (y + b_ref[...]).astype(o_ref.dtype)


def prepare_head_params(w, b, compute_dtype=jnp.bfloat16):
    """One-time parameter prep — hoisted out of the per-call path.

    w: [feature_dim, num_classes]  (== PyTorch linear.weight.T)
    b: [num_classes] or [1, num_classes]
    Biases stay f32 (added after the f32 accumulation).
    """
    w_p = jnp.asarray(w).astype(compute_dtype)
    b_p = jnp.asarray(b).astype(jnp.float32).reshape(1, -1)
    return w_p, b_p


def sleep_classifier_head(context, w, b, *, tile_b=2048):
    """Fused SleepClassifier MLP head:  relu(context) @ w + b.

    context: [B, feature_dim]  (f32, or bf16 to halve x HBM bytes)
    w:       [feature_dim, num_classes]   (from prepare_head_params)
    b:       [1, num_classes] float32     (from prepare_head_params)
    Returns  [B, num_classes] float32
    """
    B, d_in = context.shape
    d_in_w, d_out = w.shape
    assert d_in == d_in_w, "context / weight feature_dim mismatch"
    assert b.shape == (1, d_out), "bias must be prepared via prepare_head_params"

    # Batch tiling with minimal dead rows.  Feature dims are never padded: the
    # full-dim exception to the (8,128) rule makes (tb, d_in) / (tb, d_out) blocks legal.
    if B <= tile_b:
        tb, B_p = B, B                       # single full-dim tile, zero padding
    else:
        ntiles = _cdiv(B, tile_b)
        tb = _round_up(_cdiv(B, ntiles), SUBLANE)
        B_p = _cdiv(B, tb) * tb

    xp = context if B_p == B else jnp.pad(context, ((0, B_p - B), (0, 0)))

    grid = (B_p // tb,)

    # CostEstimate on the real (unpadded feature) dims.
    flops = 2 * B_p * d_in * d_out
    bytes_accessed = (xp.size * xp.dtype.itemsize + w.size * w.dtype.itemsize
                      + b.size * 4 + B_p * d_out * 4)

    out = pl.pallas_call(
        _relu_linear_kernel,
        out_shape=jax.ShapeDtypeStruct((B_p, d_out), jnp.float32),
        grid=grid,
        in_specs=[
            pl.BlockSpec((tb, d_in), lambda i: (i, 0)),      # x: tiled over batch
            pl.BlockSpec((d_in, d_out), lambda i: (0, 0)),   # w: resident in VMEM
            pl.BlockSpec((1, d_out), lambda i: (0, 0)),      # b: resident in VMEM
        ],
        out_specs=pl.BlockSpec((tb, d_out), lambda i: (i, 0)),
        compiler_params=pltpu.CompilerParams(
            dimension_semantics=("parallel",),
        ),
        cost_estimate=pl.CostEstimate(
            flops=flops, transcendentals=0, bytes_accessed=bytes_accessed),
    )(xp, w, b)

    return out if B_p == B else out[:B]


def _reference(x, w, b):
    return jnp.maximum(x, 0.0) @ w + b


if __name__ == "__main__":
    key = jax.random.PRNGKey(0)
    k_ctx, k_w, k_b, k_big = jax.random.split(key, 4)

    # Small shapes consistent with SleepClassifier's head:
    # feature_dim = 32 (GRU hidden size), num_classes = 5 sleep stages, batch = 4.
    batch, feature_dim, num_classes = 4, 32, 5

    # `context` stands in for the GRU output context[:, -1, :].
    # TODO(synk): ResNet encoder + 2-layer GRU not implemented as Pallas kernels here.
    context = jax.random.normal(k_ctx, (batch, feature_dim), dtype=jnp.float32)

    bound = 1.0 / (feature_dim ** 0.5)
    w = jax.random.uniform(k_w, (feature_dim, num_classes), jnp.float32, -bound, bound)
    b = jax.random.uniform(k_b, (1, num_classes), jnp.float32, -bound, bound)

    ref = _reference(context, w, b)

    # --- f32 operand path: numerical parity with the reference ----------------
    w_f32, b_f32 = prepare_head_params(w, b, compute_dtype=jnp.float32)
    out_f32 = sleep_classifier_head(context, w_f32, b_f32)
    jax.block_until_ready(out_f32)
    assert out_f32.shape == (batch, num_classes)
    assert jnp.allclose(out_f32, ref, atol=1e-5, rtol=1e-5), "f32 mismatch vs reference"

    # --- default bf16 MXU-operand path (f32 ReLU / bias / accumulation) -------
    w_bf16, b_bf16 = prepare_head_params(w, b)           # bf16 default, prepared once
    out_bf16 = sleep_classifier_head(context, w_bf16, b_bf16)
    jax.block_until_ready(out_bf16)
    assert jnp.allclose(out_bf16, ref, atol=5e-2, rtol=5e-2), "bf16 mismatch vs reference"

    # bf16 context as well (halves x HBM bytes; error now includes input quantization).
    out_bf16_x = sleep_classifier_head(context.astype(jnp.bfloat16), w_bf16, b_bf16)
    jax.block_until_ready(out_bf16_x)
    assert jnp.allclose(out_bf16_x, ref, atol=5e-2, rtol=5e-2), "bf16-input mismatch"

    # --- multi-tile grid with ragged batch (waste-minimizing tile choice) -----
    big_batch = 300
    ctx_big = jax.random.normal(k_big, (big_batch, feature_dim), dtype=jnp.float32)
    out_big = sleep_classifier_head(ctx_big, w_f32, b_f32, tile_b=128)  # tb=112, B_p=336
    jax.block_until_ready(out_big)
    ref_big = _reference(ctx_big, w, b)
    assert out_big.shape == (big_batch, num_classes)
    assert jnp.allclose(out_big, ref_big, atol=1e-5, rtol=1e-5), "tiled mismatch"

    print("KERNEL_OK")
</pallas_src>

<mosaic_0001>
module attributes {stable_mosaic.version = 11 : i64} {
  func.func @_relu_linear_kernel(%arg0: i32, %arg1: memref<4x32xf32, #tpu.memory_space<vmem>>, %arg2: memref<32x5xf32, #tpu.memory_space<vmem>>, %arg3: memref<1x5xf32, #tpu.memory_space<vmem>>, %arg4: memref<4x5xf32, #tpu.memory_space<vmem>>) attributes {dimension_semantics = [#tpu.dimension_semantics<parallel>], iteration_bounds = array<i64: 1>, scalar_prefetch = 0 : i64, scratch_operands = 0 : i64, tpu.core_type = #tpu.core_type<tc>, window_params = [{transform_indices = @transform_0, window_bounds = array<i64: 4, 32>}, {pipeline_mode = #tpu.pipeline_mode<synchronous>, transform_indices = @transform_1, window_bounds = array<i64: 32, 5>}, {pipeline_mode = #tpu.pipeline_mode<synchronous>, transform_indices = @transform_2, window_bounds = array<i64: 1, 5>}, {transform_indices = @transform_3, window_bounds = array<i64: 4, 5>}]} {
    %c0 = arith.constant 0 : index
    %c0_0 = arith.constant 0 : index
    %0 = vector.load %arg1[%c0, %c0_0] : memref<4x32xf32, #tpu.memory_space<vmem>>, vector<4x32xf32>
    %cst = arith.constant 0.000000e+00 : f32
    %1 = vector.broadcast %cst : f32 to vector<4x32xf32>
    %2 = arith.maximumf %0, %1 : vector<4x32xf32>
    %c0_1 = arith.constant 0 : index
    %c0_2 = arith.constant 0 : index
    %3 = vector.load %arg2[%c0_1, %c0_2] : memref<32x5xf32, #tpu.memory_space<vmem>>, vector<32x5xf32>
    %cst_3 = arith.constant dense<0.000000e+00> : vector<4x5xf32>
    %4 = tpu.matmul %2, %3, %cst_3 {dimension_numbers = #tpu.dot_dimension_numbers<[1], [0], [0], [1], [0, 0, 1, 1], [], []>} : vector<4x32xf32>, vector<32x5xf32>, vector<4x5xf32> -> vector<4x5xf32>
    %c0_4 = arith.constant 0 : index
    %c0_5 = arith.constant 0 : index
    %5 = vector.load %arg3[%c0_4, %c0_5] : memref<1x5xf32, #tpu.memory_space<vmem>>, vector<1x5xf32>
    %6 = vector.broadcast %5 : vector<1x5xf32> to vector<4x5xf32>
    %7 = arith.addf %4, %6 : vector<4x5xf32>
    %c0_6 = arith.constant 0 : index
    %c0_7 = arith.constant 0 : index
    %8 = vector.load %arg4[%c0_6, %c0_7] : memref<4x5xf32, #tpu.memory_space<vmem>>, vector<4x5xf32>
    tpu.vector_store %arg4[%c0_6, %c0_7], %7 {strides = array<i32>} : memref<4x5xf32, #tpu.memory_space<vmem>>, vector<4x5xf32>,
    return
  }
  func.func @transform_0(%arg0: i32) -> (i32, i32) {
    %c0_i32 = arith.constant 0 : i32
    %c0_i32_0 = arith.constant 0 : i32
    return %arg0, %c0_i32 : i32, i32
  }
  func.func @transform_1(%arg0: i32) -> (i32, i32) {
    %c0_i32 = arith.constant 0 : i32
    %c0_i32_0 = arith.constant 0 : i32
    %c0_i32_1 = arith.constant 0 : i32
    return %c0_i32, %c0_i32_0 : i32, i32
  }
  func.func @transform_2(%arg0: i32) -> (i32, i32) {
    %c0_i32 = arith.constant 0 : i32
    %c0_i32_0 = arith.constant 0 : i32
    %c0_i32_1 = arith.constant 0 : i32
    return %c0_i32, %c0_i32_0 : i32, i32
  }
  func.func @transform_3(%arg0: i32) -> (i32, i32) {
    %c0_i32 = arith.constant 0 : i32
    %c0_i32_0 = arith.constant 0 : i32
    return %arg0, %c0_i32 : i32, i32
  }
}

</mosaic_0001>

<llo_original>
// kernel: tpu_custom_call.1
$region0: #{tpu_custom_call.1}
  #allocation0 [shape = 'u32[]', space=smem, size = 0x4, offset = 0x4, fixed_abs, tag = 'smem constant byte address 0x4 - core index']
  #allocation1 [shape = 'u32[144,128]{1,0:T(1,128)}', space=vmem, size = 0x12000, scoped, tag = 'internal scratch']
  %s0 = inlined_call_operand.vmem [shape: f32[4,32], index: 0, kind: input, shape index: {}]
  %s1 = inlined_call_operand.vmem [shape: f32[32,5], index: 1, kind: input, shape index: {}]
  %s2 = inlined_call_operand.vmem [shape: f32[1,5], index: 2, kind: input, shape index: {}]
  %s3 = inlined_call_operand.hbm [shape: f32[4,5], index: 3, kind: output, shape index: {}]
  %s4 = sld [smem:[#allocation0]]
  $region22: #{tpu_custom_call.1} parent=0
    _
  %s6 = ssub.s32 1, %s4
  %s7 = scalar_select 0, %s6, %s4
  $region1: #{tpu_custom_call.1} parent=0
    #allocation2 [shape = 'u8[2048]{0}', space=vmem, size = 0x800, scoped, tag = 'output window, operand 0, single buffered']
    #allocation3 [shape = 's32[1]{0}', space=sflag, size = 0x4, scoped, tag = 'scoped memory for tpu_custom_call.1']
    %8 = vsyncpa [#allocation3], 0
    // Predicated region
    $region2: #{tpu_custom_call.1} parent=1 // pred_check
      _
    $region3: #{tpu_custom_call.1} parent=1 // pred_check_branch
      %10 = sbr.rel (0) target = $region5
    $region4: #{tpu_custom_call.1} parent=1 // pred_region
      _
    $region5: #{tpu_custom_call.1} parent=1 // pred_fallthru
      _
    // Predicated region
    $region6: #{tpu_custom_call.1} parent=1 // pred_check
      _
    $region7: #{tpu_custom_call.1} parent=1 // pred_check_branch
      %12 = sbr.rel (0) target = $region9
    $region8: #{tpu_custom_call.1} parent=1 // pred_region
      _
    $region9: #{tpu_custom_call.1} parent=1 // pred_fallthru
      _
    // Predicated region
    $region10: #{tpu_custom_call.1} parent=1 // pred_check
      _
    $region11: #{tpu_custom_call.1} parent=1 // pred_check_branch
      %14 = sbr.rel (0) target = $region13
    $region12: #{tpu_custom_call.1} parent=1 // pred_region
      _
    $region13: #{tpu_custom_call.1} parent=1 // pred_fallthru
      _
    %v15 = vld [vmem:[%s0] sm:$0xf]
    %v16 = vmax.f32 %v15, 0.0
    %v17 = vld [vmem:[%s1] sm:$0xff]
    %v18 = vld [vmem:[%s1 + $0x8] sm:$0xff]
    %v19 = vld [vmem:[%s1 + $0x10] sm:$0xff]
    %v20 = vld [vmem:[%s1 + $0x18] sm:$0xff]
    %v21 = vld [vmem:[%s2] sm:$0x1]
    %v23 = vlaneseq
    %v24 = vshrl.u32 %v23, 7
    %v25 = vsub.s32 0, %v24
    %v26 = vrot.slane %v21, %v25
    %vm28 = vcmask 261120
    %v30 = vsel %vm28, %v16, 0
    %32 = vmatprep.subr.mxu0 0.0
    %33 = vmatpush1.msra.mxu0 %v17
    %34 = vmatprep.subr.mxu0 0.0
    %35 = vmatpush1.msra.mxu0 %v18
    %36 = vmatprep.subr.mxu0 0.0
    %37 = vmatpush1.msra.mxu0 %v19
    %38 = vmatprep.subr.mxu0 0.0
    %39 = vmatpush1.msra.mxu0 %v20
    %40 = vmatprep.subr.mxu0 0.0
    %41 = vmatpush1.msra.mxu0 0.0
    %42 = vmatprep.subr.mxu0 0.0
    %43 = vmatpush1.msra.mxu0 0.0
    %44 = vmatprep.subr.mxu0 0.0
    %45 = vmatpush1.msra.mxu0 0.0
    %46 = vmatprep.subr.mxu0 0.0
    %47 = vmatpush1.msra.mxu0 0.0
    %48 = vmatprep.subr.mxu0 0.0
    %49 = vmatpush1.msra.mxu0 0.0
    %50 = vmatprep.subr.mxu0 0.0
    %51 = vmatpush1.msra.mxu0 0.0
    %52 = vmatprep.subr.mxu0 0.0
    %53 = vmatpush1.msra.mxu0 0.0
    %54 = vmatprep.subr.mxu0 0.0
    %55 = vmatpush1.msra.mxu0 0.0
    %56 = vmatprep.subr.mxu0 0.0
    %57 = vmatpush1.msra.mxu0 0.0
    %58 = vmatprep.subr.mxu0 0.0
    %59 = vmatpush1.msra.mxu0 0.0
    %60 = vmatprep.subr.mxu0 0.0
    %61 = vmatpush1.msra.mxu0 0.0
    %62 = vmatprep.subr.mxu0 0.0
    %63 = vmatpush1.msra.mxu0 0.0
    %64 = vmatprep.subr.mxu0 0.0
    %65 = vmatpush1.msra.mxu0 0.0
    %66 = vmatprep.subr.mxu0 0.0
    %67 = vmatpush1.msra.mxu0 0.0
    %68 = vmatprep.subr.mxu0 0.0
    %69 = vmatpush1.msra.mxu0 0.0
    %70 = vmatprep.subr.mxu0 0.0
    %71 = vmatpush1.msra.mxu0 0.0
    %72 = vmatprep.subr.mxu0 0.0
    %73 = vmatpush1.msra.mxu0 0.0
    %74 = vmatprep.subr.mxu0 0.0
    %75 = vmatpush1.msra.mxu0 0.0
    %76 = vmatprep.subr.mxu0 0.0
    %77 = vmatpush1.msra.mxu0 0.0
    %78 = vmatprep.subr.mxu0 0.0
    %79 = vmatpush1.msra.mxu0 0.0
    %80 = vmatprep.subr.mxu0 0.0
    %81 = vmatpush1.msra.mxu0 0.0
    %82 = vmatprep.subr.mxu0 0.0
    %83 = vmatpush1.msra.mxu0 0.0
    %84 = vmatprep.subr.mxu0 0.0
    %85 = vmatpush1.msra.mxu0 0.0
    %86 = vmatprep.subr.mxu0 0.0
    %87 = vmatpush1.msra.mxu0 0.0
    %88 = vmatprep.subr.mxu0 0.0
    %89 = vmatpush1.msra.mxu0 0.0
    %90 = vmatprep.subr.mxu0 0.0
    %91 = vmatpush1.msra.mxu0 0.0
    %92 = vmatprep.subr.mxu0 0.0
    %93 = vmatpush1.msra.mxu0 0.0
    %94 = vmatprep.subr.mxu0 0.0
    %95 = vmatpush1.msra.mxu0 0.0
    %96 = vmatprep.mubr.f32.mxu0 0.0
    %97 = vmatmul.mubr.f32.gmra.mrb[0].mxu0 %v30
    %v98 = vpop.f32.mrb[0].mxu0
    %v99 = vadd.f32 %v26, %v98
    %v100 = vpop.f32.mrb[0].mxu0
    %101 = vdwg.mxu0
    %vm102 = vcmask 35840
    %103 = vst.msk [vmem:[#allocation2] sm:$0xf] %vm102, %v99
    // Predicated region
    $region14: #{tpu_custom_call.1} parent=1 // pred_check
      _
    $region15: #{tpu_custom_call.1} parent=1 // pred_check_branch
      %105 = sbr.rel (0) target = $region17
    $region16: #{tpu_custom_call.1} parent=1 // pred_region
      %s107 = ssub.s32 64, 64
      %108 = vsyncadd [#allocation3], %s107
      %s110 = sshll.u32 [#allocation2], 4
      %s111 = int_to_ptr.vmem [resolvable:$true] %s110
      %113 = dma.vmem_to_hbm [thread:$0]  %s111, 64, %s3, [#allocation3]
    $region17: #{tpu_custom_call.1} parent=1 // pred_fallthru
      _
    // Predicated region
    $region18: #{tpu_custom_call.1} parent=1 // pred_check
      _
    $region19: #{tpu_custom_call.1} parent=1 // pred_check_branch
      %115 = sbr.rel (0) target = $region21
    $region20: #{tpu_custom_call.1} parent=1 // pred_region
      %116 = dma.done [#allocation3], 64
    $region21: #{tpu_custom_call.1} parent=1 // pred_fallthru
      _
    %117 = vsyncpa [#allocation3], 1

</llo_original>
